<compile_context>
chip_gen: v6e
topology: v6e:2x2x1
jax: 0.10.0
libtpu: 0.0.40
codegen_flags: <defaults>
</compile_context>

<pallas_src>
import functools

import jax
import jax.numpy as jnp
import numpy as np
from jax.experimental import pallas as pl
from jax.experimental.pallas import tpu as pltpu


NCLS_PAD = 128      # lane-padded class dim for the 2nd matmul (MXU/lane minimum)
NEG_BIG = -1.0e30   # mask value for padded lanes (exp underflows to exactly 0)


def _round_up(x, m):
    return ((x + m - 1) // m) * m


# --------------------------------------------------------------------------
# Pass 1: logits + per-row logsumexp, tiled over instances.
# --------------------------------------------------------------------------
def _logits_lse_kernel(feats_ref, w1t_ref, b1_ref, w2t_ref, b2_ref,
                       outc_ref, lse_ref, *, ncls):
    """feats tile (tm, DIM) -> out_c tile (tm, ncls) f32, row lse (tm, 1) f32."""
    feats = feats_ref[...]

    # linear1 + ReLU; activations cast to the weight dtype (bf16 drives the
    # bf16 MXU path on every generation), accumulation in f32.
    h = jnp.dot(feats.astype(w1t_ref.dtype), w1t_ref[...],
                preferred_element_type=jnp.float32) + b1_ref[...]       # (tm, HID)
    h = jnp.maximum(h, 0.0)

    # linear2, lane-padded to NCLS_PAD columns (zero weight / zero bias pad).
    logits = jnp.dot(h.astype(w2t_ref.dtype), w2t_ref[...],
                     preferred_element_type=jnp.float32) + b2_ref[...]  # (tm, 128)

    # Narrow (unpadded) logits writeback: only the real classes hit HBM.
    outc_ref[...] = logits[:, :ncls].astype(outc_ref.dtype)

    # Per-row logsumexp over the *real* classes only; padded lanes are masked,
    # so they can never win the max or contribute to the sum.
    lane = jax.lax.broadcasted_iota(jnp.int32, logits.shape, 1)
    mask = lane < ncls
    m_row = jnp.max(jnp.where(mask, logits, NEG_BIG), axis=1, keepdims=True)
    e = jnp.exp(jnp.where(mask, logits - m_row, NEG_BIG))   # padded lanes -> 0
    s_row = jnp.sum(e, axis=1, keepdims=True)
    lse_ref[...] = m_row + jnp.log(s_row)


# --------------------------------------------------------------------------
# Pass 2: alpha + context, tiled over instances.
# --------------------------------------------------------------------------
def _context_kernel(lse_total_ref, feats_ref, lse_ref, ctx_ref, alpha_ref,
                    *, n_rows):
    """alpha = exp(lse_row - LSE_total); context = feats * (N * alpha)."""
    lse_total = lse_total_ref[0, 0]                           # SMEM scalar
    alpha = jnp.exp(lse_ref[...] - lse_total)                 # (tm, 1) f32
    alpha_ref[...] = alpha.astype(alpha_ref.dtype)
    scaled = alpha * jnp.float32(n_rows)                      # (tm, 1)
    ctx_ref[...] = (feats_ref[...].astype(jnp.float32) * scaled).astype(ctx_ref.dtype)


# --------------------------------------------------------------------------
# One-time weight preparation (hoisted out of the per-call jit path).
# --------------------------------------------------------------------------
def prepare_params(w1, b1, w2, b2, matmul_dtype=jnp.bfloat16):
    """Transpose / pad / cast the linear weights. bf16 default (f32 accumulate)."""
    w1 = jnp.asarray(w1)
    b1 = jnp.asarray(b1)
    w2 = jnp.asarray(w2)
    b2 = jnp.asarray(b2)
    hid, dim = w1.shape
    ncls = int(w2.shape[0])
    assert ncls <= NCLS_PAD, "NCLS_PAD must cover the number of classes"
    assert dim % 128 == 0 and hid % 128 == 0, "dim / hidden should be lane-aligned"

    w1t = w1.T.astype(matmul_dtype)                                       # (DIM, HID)
    b1r = b1.reshape(1, hid).astype(jnp.float32)                          # (1, HID)
    w2t_pad = (jnp.zeros((hid, NCLS_PAD), matmul_dtype)
               .at[:, :ncls].set(w2.T.astype(matmul_dtype)))              # (HID, 128)
    b2_pad = (jnp.zeros((1, NCLS_PAD), jnp.float32)
              .at[0, :ncls].set(b2.astype(jnp.float32)))                  # (1, 128)
    return w1t, b1r, w2t_pad, b2_pad, ncls


# --------------------------------------------------------------------------
# Forward wrapper: two tiled, pipelined, megacore-parallel pallas_calls.
# --------------------------------------------------------------------------
@functools.partial(jax.jit, static_argnames=("ncls", "flag", "block_rows"))
def attention_forward(features, w1t, b1r, w2t_pad, b2_pad, *, ncls,
                      flag=1, block_rows=512):
    """AttentionLayer.forward(features, W_1, b_1, W_2, b_2, flag).

    Returns (context (N, DIM) in features dtype, out_c (N, ncls) f32,
             alpha (N,) f32).
    """
    if flag != 1:
        # TODO(synk): torch's flag != 1 branch is ill-defined (undefined out_c).
        raise ValueError("Only flag=1 is supported.")

    n, dim = features.shape
    hid = w1t.shape[1]
    ctx_dtype = features.dtype            # torch: context follows features dtype
    f_bytes = int(jnp.dtype(features.dtype).itemsize)
    w_bytes = int(jnp.dtype(w1t.dtype).itemsize)
    c_bytes = int(jnp.dtype(ctx_dtype).itemsize)

    tm = min(_round_up(block_rows, 8), _round_up(n, 8))
    nt = pl.cdiv(n, tm)
    par = pltpu.CompilerParams(dimension_semantics=("parallel",))

    # ---- pass 1: logits + per-row logsumexp ------------------------------
    outc, lse = pl.pallas_call(
        functools.partial(_logits_lse_kernel, ncls=ncls),
        grid=(nt,),
        in_specs=[
            pl.BlockSpec((tm, dim), lambda i: (i, 0)),           # feats tile
            pl.BlockSpec((dim, hid), lambda i: (0, 0)),          # W1^T (resident)
            pl.BlockSpec((1, hid), lambda i: (0, 0)),            # b1
            pl.BlockSpec((hid, NCLS_PAD), lambda i: (0, 0)),     # W2^T (padded)
            pl.BlockSpec((1, NCLS_PAD), lambda i: (0, 0)),       # b2 (padded)
        ],
        out_specs=(
            pl.BlockSpec((tm, ncls), lambda i: (i, 0)),          # out_c (narrow)
            pl.BlockSpec((tm, 1), lambda i: (i, 0)),             # row logsumexp
        ),
        out_shape=(
            jax.ShapeDtypeStruct((n, ncls), jnp.float32),
            jax.ShapeDtypeStruct((n, 1), jnp.float32),
        ),
        compiler_params=par,
        cost_estimate=pl.CostEstimate(
            flops=2 * n * dim * hid + 2 * n * hid * NCLS_PAD,
            transcendentals=n * (ncls + 1),
            bytes_accessed=(n * dim * f_bytes
                            + (dim * hid + hid * NCLS_PAD) * w_bytes
                            + n * (ncls + 1) * 4)),
    )(features, w1t, b1r, w2t_pad, b2_pad)

    # ---- tiny global reduction over (N, 1) in XLA between the passes -----
    m_g = jnp.max(lse)
    lse_total = (m_g + jnp.log(jnp.sum(jnp.exp(lse - m_g)))).reshape(1, 1)

    # ---- pass 2: alpha + context ------------------------------------------
    ctx, alpha = pl.pallas_call(
        functools.partial(_context_kernel, n_rows=n),
        grid=(nt,),
        in_specs=[
            pl.BlockSpec(memory_space=pltpu.MemorySpace.SMEM),   # LSE_total (1,1)
            pl.BlockSpec((tm, dim), lambda i: (i, 0)),           # feats tile
            pl.BlockSpec((tm, 1), lambda i: (i, 0)),             # row lse tile
        ],
        out_specs=(
            pl.BlockSpec((tm, dim), lambda i: (i, 0)),           # context
            pl.BlockSpec((tm, 1), lambda i: (i, 0)),             # alpha
        ),
        out_shape=(
            jax.ShapeDtypeStruct((n, dim), ctx_dtype),
            jax.ShapeDtypeStruct((n, 1), jnp.float32),
        ),
        compiler_params=par,
        cost_estimate=pl.CostEstimate(
            flops=2 * n * dim,
            transcendentals=n,
            bytes_accessed=n * dim * (f_bytes + c_bytes) + n * 8),
    )(lse_total, features, lse)

    return ctx, outc, jnp.squeeze(alpha, axis=1)


# --------------------------------------------------------------------------
# float64 numpy reference mirroring the PyTorch forward (flag == 1).
# --------------------------------------------------------------------------
def _reference(features, w1, b1, w2, b2):
    f = np.asarray(features, np.float64)
    w1 = np.asarray(w1, np.float64)
    b1 = np.asarray(b1, np.float64)
    w2 = np.asarray(w2, np.float64)
    b2 = np.asarray(b2, np.float64)
    n = f.shape[0]
    h = np.maximum(f @ w1.T + b1, 0.0)
    out_c = h @ w2.T + b2
    out = np.exp(out_c - out_c.max())
    s = out.sum(axis=1, keepdims=True)
    alpha = s / s.sum(axis=0)
    context = f * (n * alpha)
    return context, out_c, np.squeeze(alpha)


if __name__ == "__main__":
    key = jax.random.PRNGKey(0)
    kf, kw1, kb1, kw2, kb2 = jax.random.split(key, 5)

    DIM, HID, NCLS = 512, 128, 2
    w1 = jax.random.normal(kw1, (HID, DIM), dtype=jnp.float32) * (1.0 / np.sqrt(DIM))
    b1 = jax.random.normal(kb1, (HID,), dtype=jnp.float32) * 0.01
    w2 = jax.random.normal(kw2, (NCLS, HID), dtype=jnp.float32) * (1.0 / np.sqrt(HID))
    b2 = jax.random.normal(kb2, (NCLS,), dtype=jnp.float32) * 0.01

    # ---- test 1: tiny bag (N=8), exact f32 weight path, single tile ----
    N1 = 8
    feats1 = jax.random.normal(kf, (N1, DIM), dtype=jnp.float32)
    ctx_ref1, outc_ref1, alpha_ref1 = _reference(feats1, w1, b1, w2, b2)

    w1t, b1r, w2t_pad, b2_pad, ncls = prepare_params(w1, b1, w2, b2,
                                                     matmul_dtype=jnp.float32)
    ctx1, outc1, alpha1 = attention_forward(feats1, w1t, b1r, w2t_pad, b2_pad,
                                            ncls=ncls)
    jax.block_until_ready((ctx1, outc1, alpha1))
    np.testing.assert_allclose(np.asarray(outc1), outc_ref1, rtol=1e-4, atol=1e-4)
    np.testing.assert_allclose(np.asarray(alpha1), alpha_ref1, rtol=1e-4, atol=1e-4)
    np.testing.assert_allclose(np.asarray(ctx1), ctx_ref1, rtol=1e-4, atol=1e-4)
    assert ctx1.shape == (N1, DIM) and outc1.shape == (N1, NCLS) and alpha1.shape == (N1,)

    # ---- test 2: multi-tile bag (N=600, 256-row tiles -> 3 tiles, ragged last) ----
    N2 = 600
    feats2 = jax.random.normal(jax.random.PRNGKey(1), (N2, DIM), dtype=jnp.float32)
    ctx_ref2, outc_ref2, alpha_ref2 = _reference(feats2, w1, b1, w2, b2)
    ctx2, outc2, alpha2 = attention_forward(feats2, w1t, b1r, w2t_pad, b2_pad,
                                            ncls=ncls, block_rows=256)
    jax.block_until_ready((ctx2, outc2, alpha2))
    np.testing.assert_allclose(np.asarray(outc2), outc_ref2, rtol=1e-4, atol=1e-4)
    np.testing.assert_allclose(np.asarray(alpha2), alpha_ref2, rtol=1e-4, atol=1e-4)
    np.testing.assert_allclose(np.asarray(ctx2), ctx_ref2, rtol=1e-4, atol=1e-4)

    # ---- test 3: bf16 weights (default) + native bf16 features ----
    w1t_b, b1r_b, w2t_pad_b, b2_pad_b, _ = prepare_params(w1, b1, w2, b2)  # bf16
    feats2_b = feats2.astype(jnp.bfloat16)
    ctx_b, outc_b, alpha_b = attention_forward(feats2_b, w1t_b, b1r_b, w2t_pad_b,
                                               b2_pad_b, ncls=ncls, block_rows=256)
    jax.block_until_ready((ctx_b, outc_b, alpha_b))
    ctx_rb, outc_rb, alpha_rb = _reference(np.asarray(feats2_b, np.float32),
                                           w1, b1, w2, b2)
    np.testing.assert_allclose(np.asarray(outc_b, np.float32), outc_rb,
                               rtol=1e-1, atol=1e-1)
    np.testing.assert_allclose(np.asarray(alpha_b, np.float32), alpha_rb,
                               rtol=1e-1, atol=1e-1)
    np.testing.assert_allclose(np.asarray(ctx_b, np.float32), ctx_rb,
                               rtol=1e-1, atol=1e-1)
    assert ctx_b.dtype == jnp.bfloat16  # context follows the features dtype

    print("KERNEL_OK")
</pallas_src>

<mosaic_0001>
module attributes {stable_mosaic.version = 11 : i64} {
  func.func @_logits_lse_kernel(%arg0: i32, %arg1: memref<8x512xf32, #tpu.memory_space<vmem>>, %arg2: memref<512x128xf32, #tpu.memory_space<vmem>>, %arg3: memref<1x128xf32, #tpu.memory_space<vmem>>, %arg4: memref<128x128xf32, #tpu.memory_space<vmem>>, %arg5: memref<1x128xf32, #tpu.memory_space<vmem>>, %arg6: memref<8x2xf32, #tpu.memory_space<vmem>>, %arg7: memref<8x1xf32, #tpu.memory_space<vmem>>) attributes {dimension_semantics = [#tpu.dimension_semantics<parallel>], iteration_bounds = array<i64: 1>, scalar_prefetch = 0 : i64, scratch_operands = 0 : i64, tpu.core_type = #tpu.core_type<tc>, window_params = [{transform_indices = @transform_0, window_bounds = array<i64: 8, 512>}, {pipeline_mode = #tpu.pipeline_mode<synchronous>, transform_indices = @transform_1, window_bounds = array<i64: 512, 128>}, {pipeline_mode = #tpu.pipeline_mode<synchronous>, transform_indices = @transform_2, window_bounds = array<i64: 1, 128>}, {pipeline_mode = #tpu.pipeline_mode<synchronous>, transform_indices = @transform_3, window_bounds = array<i64: 128, 128>}, {pipeline_mode = #tpu.pipeline_mode<synchronous>, transform_indices = @transform_4, window_bounds = array<i64: 1, 128>}, {transform_indices = @transform_5, window_bounds = array<i64: 8, 2>}, {transform_indices = @transform_6, window_bounds = array<i64: 8, 1>}]} {
    %c0 = arith.constant 0 : index
    %c0_0 = arith.constant 0 : index
    %0 = vector.load %arg1[%c0, %c0_0] : memref<8x512xf32, #tpu.memory_space<vmem>>, vector<8x512xf32>
    %c0_1 = arith.constant 0 : index
    %c0_2 = arith.constant 0 : index
    %1 = vector.load %arg2[%c0_1, %c0_2] : memref<512x128xf32, #tpu.memory_space<vmem>>, vector<512x128xf32>
    %cst = arith.constant dense<0.000000e+00> : vector<8x128xf32>
    %2 = tpu.matmul %0, %1, %cst {dimension_numbers = #tpu.dot_dimension_numbers<[1], [0], [0], [1], [0, 0, 1, 1], [], []>} : vector<8x512xf32>, vector<512x128xf32>, vector<8x128xf32> -> vector<8x128xf32>
    %c0_3 = arith.constant 0 : index
    %c0_4 = arith.constant 0 : index
    %3 = vector.load %arg3[%c0_3, %c0_4] : memref<1x128xf32, #tpu.memory_space<vmem>>, vector<1x128xf32>
    %4 = vector.broadcast %3 : vector<1x128xf32> to vector<8x128xf32>
    %5 = arith.addf %2, %4 : vector<8x128xf32>
    %cst_5 = arith.constant 0.000000e+00 : f32
    %6 = vector.broadcast %cst_5 : f32 to vector<8x128xf32>
    %7 = arith.maximumf %5, %6 : vector<8x128xf32>
    %c0_6 = arith.constant 0 : index
    %c0_7 = arith.constant 0 : index
    %8 = vector.load %arg4[%c0_6, %c0_7] : memref<128x128xf32, #tpu.memory_space<vmem>>, vector<128x128xf32>
    %cst_8 = arith.constant dense<0.000000e+00> : vector<8x128xf32>
    %9 = tpu.matmul %7, %8, %cst_8 {dimension_numbers = #tpu.dot_dimension_numbers<[1], [0], [0], [1], [0, 0, 1, 1], [], []>} : vector<8x128xf32>, vector<128x128xf32>, vector<8x128xf32> -> vector<8x128xf32>
    %c0_9 = arith.constant 0 : index
    %c0_10 = arith.constant 0 : index
    %10 = vector.load %arg5[%c0_9, %c0_10] : memref<1x128xf32, #tpu.memory_space<vmem>>, vector<1x128xf32>
    %11 = vector.broadcast %10 : vector<1x128xf32> to vector<8x128xf32>
    %12 = arith.addf %9, %11 : vector<8x128xf32>
    %13 = vector.extract_strided_slice %12 {offsets = [0, 0], sizes = [8, 2], strides = [1, 1]} : vector<8x128xf32> to vector<8x2xf32>
    %c0_11 = arith.constant 0 : index
    %c0_12 = arith.constant 0 : index
    %14 = vector.load %arg6[%c0_11, %c0_12] : memref<8x2xf32, #tpu.memory_space<vmem>>, vector<8x2xf32>
    tpu.vector_store %arg6[%c0_11, %c0_12], %13 {strides = array<i32>} : memref<8x2xf32, #tpu.memory_space<vmem>>, vector<8x2xf32>,
    %15 = tpu.iota {dimensions = array<i32: 1>} : vector<8x128xi32>
    %c2_i32 = arith.constant 2 : i32
    %16 = vector.broadcast %c2_i32 : i32 to vector<8x128xi32>
    %17 = arith.cmpi slt, %15, %16 : vector<8x128xi32>
    %cst_13 = arith.constant -1.000000e+30 : f32
    %18 = vector.broadcast %cst_13 : f32 to vector<8x128xf32>
    %19 = arith.select %17, %12, %18 : vector<8x128xi1>, vector<8x128xf32>
    %cst_14 = arith.constant dense<0xFF800000> : vector<8xf32>
    %20 = vector.multi_reduction <maximumf>, %19, %cst_14 [1] : vector<8x128xf32> to vector<8xf32>
    %21 = vector.shape_cast %20 : vector<8xf32> to vector<8x1xf32>
    %22 = vector.broadcast %21 : vector<8x1xf32> to vector<8x128xf32>
    %23 = arith.subf %12, %22 : vector<8x128xf32>
    %cst_15 = arith.constant -1.000000e+30 : f32
    %24 = vector.broadcast %cst_15 : f32 to vector<8x128xf32>
    %25 = arith.select %17, %23, %24 : vector<8x128xi1>, vector<8x128xf32>
    %26 = math.exp %25 : vector<8x128xf32>
    %cst_16 = arith.constant dense<0.000000e+00> : vector<8xf32>
    %27 = vector.multi_reduction <add>, %26, %cst_16 [1] : vector<8x128xf32> to vector<8xf32>
    %28 = vector.shape_cast %27 : vector<8xf32> to vector<8x1xf32>
    %29 = math.log %28 : vector<8x1xf32>
    %30 = arith.addf %21, %29 : vector<8x1xf32>
    %c0_17 = arith.constant 0 : index
    %c0_18 = arith.constant 0 : index
    %31 = vector.load %arg7[%c0_17, %c0_18] : memref<8x1xf32, #tpu.memory_space<vmem>>, vector<8x1xf32>
    tpu.vector_store %arg7[%c0_17, %c0_18], %30 {strides = array<i32>} : memref<8x1xf32, #tpu.memory_space<vmem>>, vector<8x1xf32>,
    return
  }
  func.func @transform_0(%arg0: i32) -> (i32, i32) {
    %c0_i32 = arith.constant 0 : i32
    %c0_i32_0 = arith.constant 0 : i32
    return %arg0, %c0_i32 : i32, i32
  }
  func.func @transform_1(%arg0: i32) -> (i32, i32) {
    %c0_i32 = arith.constant 0 : i32
    %c0_i32_0 = arith.constant 0 : i32
    %c0_i32_1 = arith.constant 0 : i32
    return %c0_i32, %c0_i32_0 : i32, i32
  }
  func.func @transform_2(%arg0: i32) -> (i32, i32) {
    %c0_i32 = arith.constant 0 : i32
    %c0_i32_0 = arith.constant 0 : i32
    %c0_i32_1 = arith.constant 0 : i32
    return %c0_i32, %c0_i32_0 : i32, i32
  }
  func.func @transform_3(%arg0: i32) -> (i32, i32) {
    %c0_i32 = arith.constant 0 : i32
    %c0_i32_0 = arith.constant 0 : i32
    %c0_i32_1 = arith.constant 0 : i32
    return %c0_i32, %c0_i32_0 : i32, i32
  }
  func.func @transform_4(%arg0: i32) -> (i32, i32) {
    %c0_i32 = arith.constant 0 : i32
    %c0_i32_0 = arith.constant 0 : i32
    %c0_i32_1 = arith.constant 0 : i32
    return %c0_i32, %c0_i32_0 : i32, i32
  }
  func.func @transform_5(%arg0: i32) -> (i32, i32) {
    %c0_i32 = arith.constant 0 : i32
    %c0_i32_0 = arith.constant 0 : i32
    return %arg0, %c0_i32 : i32, i32
  }
  func.func @transform_6(%arg0: i32) -> (i32, i32) {
    %c0_i32 = arith.constant 0 : i32
    %c0_i32_0 = arith.constant 0 : i32
    return %arg0, %c0_i32 : i32, i32
  }
}

module attributes {stable_mosaic.version = 11 : i64} {
  func.func @_context_kernel(%arg0: i32, %arg1: memref<1x1xf32, #tpu.memory_space<smem>>, %arg2: memref<8x512xf32, #tpu.memory_space<vmem>>, %arg3: memref<8x1xf32, #tpu.memory_space<vmem>>, %arg4: memref<8x512xf32, #tpu.memory_space<vmem>>, %arg5: memref<8x1xf32, #tpu.memory_space<vmem>>) attributes {dimension_semantics = [#tpu.dimension_semantics<parallel>], iteration_bounds = array<i64: 1>, scalar_prefetch = 0 : i64, scratch_operands = 0 : i64, tpu.core_type = #tpu.core_type<tc>, window_params = [{transform_indices = @transform_0, window_bounds = array<i64: 1, 1>}, {transform_indices = @transform_1, window_bounds = array<i64: 8, 512>}, {transform_indices = @transform_2, window_bounds = array<i64: 8, 1>}, {transform_indices = @transform_3, window_bounds = array<i64: 8, 512>}, {transform_indices = @transform_4, window_bounds = array<i64: 8, 1>}]} {
    %c0 = arith.constant 0 : index
    %c0_0 = arith.constant 0 : index
    %0 = memref.load %arg1[%c0, %c0_0] : memref<1x1xf32, #tpu.memory_space<smem>>
    %c0_1 = arith.constant 0 : index
    %c0_2 = arith.constant 0 : index
    %1 = vector.load %arg3[%c0_1, %c0_2] : memref<8x1xf32, #tpu.memory_space<vmem>>, vector<8x1xf32>
    %2 = vector.broadcast %0 : f32 to vector<8x1xf32>
    %3 = arith.subf %1, %2 : vector<8x1xf32>
    %4 = math.exp %3 : vector<8x1xf32>
    %c0_3 = arith.constant 0 : index
    %c0_4 = arith.constant 0 : index
    %5 = vector.load %arg5[%c0_3, %c0_4] : memref<8x1xf32, #tpu.memory_space<vmem>>, vector<8x1xf32>
    tpu.vector_store %arg5[%c0_3, %c0_4], %4 {strides = array<i32>} : memref<8x1xf32, #tpu.memory_space<vmem>>, vector<8x1xf32>,
    %cst = arith.constant 8.000000e+00 : f32
    %6 = vector.broadcast %cst : f32 to vector<8x1xf32>
    %7 = arith.mulf %4, %6 : vector<8x1xf32>
    %c0_5 = arith.constant 0 : index
    %c0_6 = arith.constant 0 : index
    %8 = vector.load %arg2[%c0_5, %c0_6] : memref<8x512xf32, #tpu.memory_space<vmem>>, vector<8x512xf32>
    %9 = vector.broadcast %7 : vector<8x1xf32> to vector<8x512xf32>
    %10 = arith.mulf %8, %9 : vector<8x512xf32>
    %c0_7 = arith.constant 0 : index
    %c0_8 = arith.constant 0 : index
    %11 = vector.load %arg4[%c0_7, %c0_8] : memref<8x512xf32, #tpu.memory_space<vmem>>, vector<8x512xf32>
    tpu.vector_store %arg4[%c0_7, %c0_8], %10 {strides = array<i32>} : memref<8x512xf32, #tpu.memory_space<vmem>>, vector<8x512xf32>,
    return
  }
  func.func @transform_0(%arg0: i32) -> (i32, i32) {
    %c0_i32 = arith.constant 0 : i32
    %c0_i32_0 = arith.constant 0 : i32
    %c0_i32_1 = arith.constant 0 : i32
    return %c0_i32, %c0_i32_0 : i32, i32
  }
  func.func @transform_1(%arg0: i32) -> (i32, i32) {
    %c0_i32 = arith.constant 0 : i32
    %c0_i32_0 = arith.constant 0 : i32
    return %arg0, %c0_i32 : i32, i32
  }
  func.func @transform_2(%arg0: i32) -> (i32, i32) {
    %c0_i32 = arith.constant 0 : i32
    %c0_i32_0 = arith.constant 0 : i32
    return %arg0, %c0_i32 : i32, i32
  }
  func.func @transform_3(%arg0: i32) -> (i32, i32) {
    %c0_i32 = arith.constant 0 : i32
    %c0_i32_0 = arith.constant 0 : i32
    return %arg0, %c0_i32 : i32, i32
  }
  func.func @transform_4(%arg0: i32) -> (i32, i32) {
    %c0_i32 = arith.constant 0 : i32
    %c0_i32_0 = arith.constant 0 : i32
    return %arg0, %c0_i32 : i32, i32
  }
}

</mosaic_0001>

<llo_original>
// kernel: attention_forward.3
$region0: #{attention_forward.3}
  #allocation0 [shape = 'u32[]', space=smem, size = 0x4, offset = 0x4, fixed_abs, tag = 'smem constant byte address 0x4 - core index']
  #allocation1 [shape = 'u32[144,128]{1,0:T(1,128)}', space=vmem, size = 0x12000, scoped, tag = 'internal scratch']
  #allocation2 [shape = 'f32[1,1]{1,0:T(1,128)S(6)}', space=smem, size = 0x200, scoped, tag = 'scoped memory for attention_forward.3']
  %s0 = inlined_call_operand.<no memory space> [shape: f32[1,1], index: 0, kind: input, shape index: {}]
  %s1 = inlined_call_operand.vmem [shape: f32[8,512], index: 1, kind: input, shape index: {}]
  %s2 = inlined_call_operand.vmem [shape: f32[8,1], index: 2, kind: input, shape index: {}]
  %s3 = inlined_call_operand.hbm [shape: f32[8,512], index: 3, kind: output, shape index: {0}]
  %s4 = inlined_call_operand.vmem [shape: f32[8,1], index: 4, kind: output, shape index: {1}]
  %5 = xla_tuple %s3, %s4
  %s6 = sld [smem:[#allocation0]]
  $region30: #{attention_forward.3} parent=0
    _
  %s8 = ssub.s32 1, %s6
  %s9 = scalar_select 0, %s8, %s6
  %10 = sst [smem:[#allocation2]] %s0
  $region1: #{attention_forward.3} parent=0
    #allocation3 [shape = 'u8[16384]{0}', space=vmem, size = 0x4000, scoped, tag = 'output window, operand 0, single buffered']
    #allocation4 [shape = 's32[1]{0}', space=sflag, size = 0x4, scoped, tag = 'scoped memory for attention_forward.3']
    %11 = vsyncpa [#allocation4], 0
    // Predicated region
    $region2: #{attention_forward.3} parent=1 // pred_check
      _
    $region3: #{attention_forward.3} parent=1 // pred_check_branch
      %13 = sbr.rel (0) target = $region5
    $region4: #{attention_forward.3} parent=1 // pred_region
      _
    $region5: #{attention_forward.3} parent=1 // pred_fallthru
      _
    // Predicated region
    $region6: #{attention_forward.3} parent=1 // pred_check
      _
    $region7: #{attention_forward.3} parent=1 // pred_check_branch
      %15 = sbr.rel (0) target = $region9
    $region8: #{attention_forward.3} parent=1 // pred_region
      _
    $region9: #{attention_forward.3} parent=1 // pred_fallthru
      _
    // Predicated region
    $region10: #{attention_forward.3} parent=1 // pred_check
      _
    $region11: #{attention_forward.3} parent=1 // pred_check_branch
      %17 = sbr.rel (0) target = $region13
    $region12: #{attention_forward.3} parent=1 // pred_region
      _
    $region13: #{attention_forward.3} parent=1 // pred_fallthru
      _
    %s18 = sld [smem:[#allocation2]]
    %v19 = vld [vmem:[%s2] sm:$0xff]
    %v20 = vstv %s18
    %v21 = vsub.f32 %v19, %v20
    %v22 = vmul.f32 %v21, 1.442695
    %v23 = vpow.pop %v22
    %vm24 = vcmask 7168
    %25 = vst.msk [vmem:[%s4] sm:$0xff] %vm24, %v23
    %v26 = vmul.f32 %v23, 8.0
    %v27 = vld [vmem:[%s1] sm:$0xff]
    %v28 = vld [vmem:[%s1 + $0x8] sm:$0xff]
    %v29 = vld [vmem:[%s1 + $0x10] sm:$0xff]
    %v30 = vld [vmem:[%s1 + $0x18] sm:$0xff]
    %32 = vset.pattern.permute.xlu0 0
    %33 = vperm.xlu0 %32, %v26
    %v34 = vpop.permute.xlu0 %33
    %v36 = vmul.f32 %v27, %v34
    %v37 = vmul.f32 %v28, %v34
    %v38 = vmul.f32 %v29, %v34
    %v39 = vmul.f32 %v30, %v34
    %40 = vst [vmem:[#allocation3] sm:$0xff] %v36
    %41 = vst [vmem:[#allocation3 + $0x8] sm:$0xff] %v37
    %42 = vst [vmem:[#allocation3 + $0x10] sm:$0xff] %v38
    %43 = vst [vmem:[#allocation3 + $0x18] sm:$0xff] %v39
    // Predicated region
    $region14: #{attention_forward.3} parent=1 // pred_check
      _
    $region15: #{attention_forward.3} parent=1 // pred_check_branch
      %45 = sbr.rel (0) target = $region17
    $region16: #{attention_forward.3} parent=1 // pred_region
      %s47 = ssub.s32 512, 512
      %48 = vsyncadd [#allocation4], %s47
      %s50 = sshll.u32 [#allocation3], 4
      %s51 = int_to_ptr.vmem [resolvable:$true] %s50
      %53 = dma.vmem_to_hbm [thread:$0]  %s51, 512, %s3, [#allocation4]
    $region17: #{attention_forward.3} parent=1 // pred_fallthru
      _
    // Predicated region
    $region18: #{attention_forward.3} parent=1 // pred_check
      _
    $region19: #{attention_forward.3} parent=1 // pred_check_branch
      %55 = sbr.rel (0) target = $region21
    $region20: #{attention_forward.3} parent=1 // pred_region
      _
    $region21: #{attention_forward.3} parent=1 // pred_fallthru
      _
    // Predicated region
    $region22: #{attention_forward.3} parent=1 // pred_check
      _
    $region23: #{attention_forward.3} parent=1 // pred_check_branch
      %57 = sbr.rel (0) target = $region25
    $region24: #{attention_forward.3} parent=1 // pred_region
      %58 = dma.done [#allocation4], 512
    $region25: #{attention_forward.3} parent=1 // pred_fallthru
      _
    // Predicated region
    $region26: #{attention_forward.3} parent=1 // pred_check
      _
    $region27: #{attention_forward.3} parent=1 // pred_check_branch
      %60 = sbr.rel (0) target = $region29
    $region28: #{attention_forward.3} parent=1 // pred_region
      _
    $region29: #{attention_forward.3} parent=1 // pred_fallthru
      _
    %61 = vsyncpa [#allocation4], 1

// kernel: attention_forward.2
$region0: #{attention_forward.2}
  #allocation0 [shape = 'u32[]', space=smem, size = 0x4, offset = 0x4, fixed_abs, tag = 'smem constant byte address 0x4 - core index']
  #allocation1 [shape = 'u32[144,128]{1,0:T(1,128)}', space=vmem, size = 0x12000, scoped, tag = 'internal scratch']
  %s0 = inlined_call_operand.hbm [shape: f32[8,512], index: 0, kind: input, shape index: {}]
  %s1 = inlined_call_operand.hbm [shape: f32[512,128], index: 1, kind: input, shape index: {}]
  %s2 = inlined_call_operand.vmem [shape: f32[1,128], index: 2, kind: input, shape index: {}]
  %s3 = inlined_call_operand.hbm [shape: f32[128,128], index: 3, kind: input, shape index: {}]
  %s4 = inlined_call_operand.vmem [shape: f32[1,128], index: 4, kind: input, shape index: {}]
  %s5 = inlined_call_operand.vmem [shape: f32[8,2], index: 5, kind: output, shape index: {0}]
  %s6 = inlined_call_operand.vmem [shape: f32[8,1], index: 6, kind: output, shape index: {1}]
  %7 = xla_tuple %s5, %s6
  %s8 = sld [smem:[#allocation0]]
  $region50: #{attention_forward.2} parent=0
    _
  %s10 = ssub.s32 1, %s8
  %s11 = scalar_select 0, %s10, %s8
  $region1: #{attention_forward.2} parent=0
    #allocation2 [shape = 'u8[16384]{0}', space=vmem, size = 0x4000, scoped, tag = 'input window, operand 0, single buffered']
    #allocation3 [shape = 's32[1]{0}', space=sflag, size = 0x4, scoped, tag = 'scoped memory for attention_forward.2']
    #allocation4 [shape = 'u8[262144]{0}', space=vmem, size = 0x40000, scoped, tag = 'input window, operand 1, single buffered']
    #allocation5 [shape = 's32[1]{0}', space=sflag, size = 0x4, scoped, tag = 'scoped memory for attention_forward.2']
    #allocation6 [shape = 'u8[65536]{0}', space=vmem, size = 0x10000, scoped, tag = 'input window, operand 3, single buffered']
    %12 = vsyncpa [#allocation3], 0
    %13 = vsyncpa [#allocation5], 0
    // Predicated region
    $region2: #{attention_forward.2} parent=1 // pred_check
      _
    $region3: #{attention_forward.2} parent=1 // pred_check_branch
      %15 = sbr.rel (0) target = $region5
    $region4: #{attention_forward.2} parent=1 // pred_region
      %s17 = ssub.s32 512, 512
      %18 = vsyncadd [#allocation3], %s17
      %s20 = sshll.u32 [#allocation2], 4
      %s21 = int_to_ptr.vmem [resolvable:$true] %s20
      %23 = dma.hbm_to_vmem [thread:$0]  %s0, 512, %s21, [#allocation3]
    $region5: #{attention_forward.2} parent=1 // pred_fallthru
      _
    // Predicated region
    $region6: #{attention_forward.2} parent=1 // pred_check
      _
    $region7: #{attention_forward.2} parent=1 // pred_check_branch
      %25 = sbr.rel (0) target = $region9
    $region8: #{attention_forward.2} parent=1 // pred_region
      %s27 = ssub.s32 8192, 8192
      %28 = vsyncadd [#allocation5], %s27
      %s29 = sshll.u32 [#allocation4], 4
      %s30 = int_to_ptr.vmem [resolvable:$true] %s29
      %35 = dma.hbm_to_vmem [thread:$0]  %s1, 8192, %s30, [#allocation5], 128, 128, 8
    $region9: #{attention_forward.2} parent=1 // pred_fallthru
      _
    // Predicated region
    $region10: #{attention_forward.2} parent=1 // pred_check
      _
    $region11: #{attention_forward.2} parent=1 // pred_check_branch
      %37 = sbr.rel (0) target = $region13
    $region12: #{attention_forward.2} parent=1 // pred_region
      _
    $region13: #{attention_forward.2} parent=1 // pred_fallthru
      _
    // Predicated region
    $region14: #{attention_forward.2} parent=1 // pred_check
      _
    $region15: #{attention_forward.2} parent=1 // pred_check_branch
      %39 = sbr.rel (0) target = $region17
    $region16: #{attention_forward.2} parent=1 // pred_region
      %s41 = ssub.s32 2048, 2048
      %42 = vsyncadd [#allocation5], %s41
      %s43 = sshll.u32 [#allocation6], 4
      %s44 = int_to_ptr.vmem [resolvable:$true] %s43
      %49 = dma.hbm_to_vmem [thread:$0]  %s3, 2048, %s44, [#allocation5], 128, 128, 8
    $region17: #{attention_forward.2} parent=1 // pred_fallthru
      _
    // Predicated region
    $region18: #{attention_forward.2} parent=1 // pred_check
      _
    $region19: #{attention_forward.2} parent=1 // pred_check_branch
      %51 = sbr.rel (0) target = $region21
    $region20: #{attention_forward.2} parent=1 // pred_region
      _
    $region21: #{attention_forward.2} parent=1 // pred_fallthru
      _
    // Predicated region
    $region22: #{attention_forward.2} parent=1 // pred_check
      _
    $region23: #{attention_forward.2} parent=1 // pred_check_branch
      %53 = sbr.rel (0) target = $region25
    $region24: #{attention_forward.2} parent=1 // pred_region
      %54 = dma.done [#allocation3], 512
    $region25: #{attention_forward.2} parent=1 // pred_fallthru
      _
    // Predicated region
    $region26: #{attention_forward.2} parent=1 // pred_check
      _
    $region27: #{attention_forward.2} parent=1 // pred_check_branch
      %56 = sbr.rel (0) target = $region29
    $region28: #{attention_forward.2} parent=1 // pred_region
      %57 = dma.done [#allocation5], 8192
    $region29: #{attention_forward.2} parent=1 // pred_fallthru
      _
    // Predicated region
    $region30: #{attention_forward.2} parent=1 // pred_check
      _
    $region31: #{attention_forward.2} parent=1 // pred_check_branch
      %59 = sbr.rel (0) target = $region33
    $region32: #{attention_forward.2} parent=1 // pred_region
      %60 = dma.done [#allocation5], 2048
    $region33: #{attention_forward.2} parent=1 // pred_fallthru
      _
    %v61 = vld [vmem:[#allocation2] sm:$0xff]
    %v62 = vld [vmem:[#allocation2 + $0x8] sm:$0xff]
    %v63 = vld [vmem:[#allocation2 + $0x10] sm:$0xff]
    %v64 = vld [vmem:[#allocation2 + $0x18] sm:$0xff]
    %v65 = vld [vmem:[#allocation4] sm:$0xff]
    %v66 = vld [vmem:[#allocation4 + $0x8] sm:$0xff]
    %v67 = vld [vmem:[#allocation4 + $0x10] sm:$0xff]
    %v68 = vld [vmem:[#allocation4 + $0x18] sm:$0xff]
    %v69 = vld [vmem:[#allocation4 + $0x20] sm:$0xff]
    %v70 = vld [vmem:[#allocation4 + $0x28] sm:$0xff]
    %v71 = vld [vmem:[#allocation4 + $0x30] sm:$0xff]
    %v72 = vld [vmem:[#allocation4 + $0x38] sm:$0xff]
    %v73 = vld [vmem:[#allocation4 + $0x40] sm:$0xff]
    %v74 = vld [vmem:[#allocation4 + $0x48] sm:$0xff]
    %v75 = vld [vmem:[#allocation4 + $0x50] sm:$0xff]
    %v76 = vld [vmem:[#allocation4 + $0x58] sm:$0xff]
    %v77 = vld [vmem:[#allocation4 + $0x60] sm:$0xff]
    %v78 = vld [vmem:[#allocation4 + $0x68] sm:$0xff]
    %v79 = vld [vmem:[#allocation4 + $0x70] sm:$0xff]
    %v80 = vld [vmem:[#allocation4 + $0x78] sm:$0xff]
    %v81 = vld [vmem:[#allocation4 + $0x80] sm:$0xff]
    %v82 = vld [vmem:[#allocation4 + $0x88] sm:$0xff]
    %v83 = vld [vmem:[#allocation4 + $0x90] sm:$0xff]
    %v84 = vld [vmem:[#allocation4 + $0x98] sm:$0xff]
    %v85 = vld [vmem:[#allocation4 + $0xa0] sm:$0xff]
    %v86 = vld [vmem:[#allocation4 + $0xa8] sm:$0xff]
    %v87 = vld [vmem:[#allocation4 + $0xb0] sm:$0xff]
    %v88 = vld [vmem:[#allocation4 + $0xb8] sm:$0xff]
    %v89 = vld [vmem:[#allocation4 + $0xc0] sm:$0xff]
    %v90 = vld [vmem:[#allocation4 + $0xc8] sm:$0xff]
    %v91 = vld [vmem:[#allocation4 + $0xd0] sm:$0xff]
    %v92 = vld [vmem:[#allocation4 + $0xd8] sm:$0xff]
    %v93 = vld [vmem:[#allocation4 + $0xe0] sm:$0xff]
    %v94 = vld [vmem:[#allocation4 + $0xe8] sm:$0xff]
    %v95 = vld [vmem:[#allocation4 + $0xf0] sm:$0xff]
    %v96 = vld [vmem:[#allocation4 + $0xf8] sm:$0xff]
    %v97 = vld [vmem:[#allocation4 + $0x100] sm:$0xff]
    %v98 = vld [vmem:[#allocation4 + $0x108] sm:$0xff]
    %v99 = vld [vmem:[#allocation4 + $0x110] sm:$0xff]
    %v100 = vld [vmem:[#allocation4 + $0x118] sm:$0xff]
    %v101 = vld [vmem:[#allocation4 + $0x120] sm:$0xff]
    %v102 = vld [vmem:[#allocation4 + $0x128] sm:$0xff]
    %v103 = vld [vmem:[#allocation4 + $0x130] sm:$0xff]
    %v104 = vld [vmem:[#allocation4 + $0x138] sm:$0xff]
    %v105 = vld [vmem:[#allocation4 + $0x140] sm:$0xff]
    %v106 = vld [vmem:[#allocation4 + $0x148] sm:$0xff]
    %v107 = vld [vmem:[#allocation4 + $0x150] sm:$0xff]
    %v108 = vld [vmem:[#allocation4 + $0x158] sm:$0xff]
    %v109 = vld [vmem:[#allocation4 + $0x160] sm:$0xff]
    %v110 = vld [vmem:[#allocation4 + $0x168] sm:$0xff]
    %v111 = vld [vmem:[#allocation4 + $0x170] sm:$0xff]
    %v112 = vld [vmem:[#allocation4 + $0x178] sm:$0xff]
    %v113 = vld [vmem:[#allocation4 + $0x180] sm:$0xff]
    %v114 = vld [vmem:[#allocation4 + $0x188] sm:$0xff]
    %v115 = vld [vmem:[#allocation4 + $0x190] sm:$0xff]
    %v116 = vld [vmem:[#allocation4 + $0x198] sm:$0xff]
    %v117 = vld [vmem:[#allocation4 + $0x1a0] sm:$0xff]
    %v118 = vld [vmem:[#allocation4 + $0x1a8] sm:$0xff]
    %v119 = vld [vmem:[#allocation4 + $0x1b0] sm:$0xff]
    %v120 = vld [vmem:[#allocation4 + $0x1b8] sm:$0xff]
    %v121 = vld [vmem:[#allocation4 + $0x1c0] sm:$0xff]
    %v122 = vld [vmem:[#allocation4 + $0x1c8] sm:$0xff]
    %v123 = vld [vmem:[#allocation4 + $0x1d0] sm:$0xff]
    %v124 = vld [vmem:[#allocation4 + $0x1d8] sm:$0xff]
    %v125 = vld [vmem:[#allocation4 + $0x1e0] sm:$0xff]
    %v126 = vld [vmem:[#allocation4 + $0x1e8] sm:$0xff]
    %v127 = vld [vmem:[#allocation4 + $0x1f0] sm:$0xff]
    %v128 = vld [vmem:[#allocation4 + $0x1f8] sm:$0xff]
    %v129 = vld [vmem:[%s2] sm:$0x1]
    %v131 = vlaneseq
    %v132 = vshrl.u32 %v131, 7
    %v133 = vsub.s32 0, %v132
    %v134 = vrot.slane %v129, %v133
    %136 = vmatprep.subr.mxu0 0.0
    %137 = vmatpush1.msra.mxu0 %v80
    %138 = vmatprep.subr.mxu0 0.0
    %139 = vmatpush1.msra.mxu0 %v79
    %140 = vmatprep.subr.mxu0 0.0
    %141 = vmatpush1.msra.mxu0 %v78
    %142 = vmatprep.subr.mxu0 0.0
    %143 = vmatpush1.msra.mxu0 %v77
    %144 = vmatprep.subr.mxu0 0.0
    %145 = vmatpush1.msra.mxu0 %v76
    %146 = vmatprep.subr.mxu0 0.0
    %147 = vmatpush1.msra.mxu0 %v75
    %148 = vmatprep.subr.mxu0 0.0
    %149 = vmatpush1.msra.mxu0 %v74
    %150 = vmatprep.subr.mxu0 0.0
    %151 = vmatpush1.msra.mxu0 %v73
    %152 = vmatprep.subr.mxu0 0.0
    %153 = vmatpush1.msra.mxu0 %v72
    %154 = vmatprep.subr.mxu0 0.0
    %155 = vmatpush1.msra.mxu0 %v71
    %156 = vmatprep.subr.mxu0 0.0
    %157 = vmatpush1.msra.mxu0 %v70
    %158 = vmatprep.subr.mxu0 0.0
    %159 = vmatpush1.msra.mxu0 %v69
    %160 = vmatprep.subr.mxu0 0.0
    %161 = vmatpush1.msra.mxu0 %v68
    %162 = vmatprep.subr.mxu0 0.0
    %163 = vmatpush1.msra.mxu0 %v67
    %164 = vmatprep.subr.mxu0 0.0
    %165 = vmatpush1.msra.mxu0 %v66
    %166 = vmatprep.subr.mxu0 0.0
    %167 = vmatpush1.msra.mxu0 %v65
    %168 = vmatprep.subr.mxu0 0.0
    %169 = vmatpush2.msra.mxu0 %v96
    %170 = vmatprep.subr.mxu0 0.0
    %171 = vmatpush2.msra.mxu0 %v95
    %172 = vmatprep.subr.mxu0 0.0
    %173 = vmatpush2.msra.mxu0 %v94
    %174 = vmatprep.subr.mxu0 0.0
    %175 = vmatpush2.msra.mxu0 %v93
    %176 = vmatprep.subr.mxu0 0.0
    %177 = vmatpush2.msra.mxu0 %v92
    %178 = vmatprep.subr.mxu0 0.0
    %179 = vmatpush2.msra.mxu0 %v91
    %180 = vmatprep.subr.mxu0 0.0
    %181 = vmatpush2.msra.mxu0 %v90
    %182 = vmatprep.subr.mxu0 0.0
    %183 = vmatpush2.msra.mxu0 %v89
    %184 = vmatprep.subr.mxu0 0.0
    %185 = vmatpush2.msra.mxu0 %v88
    %186 = vmatprep.subr.mxu0 0.0
    %187 = vmatpush2.msra.mxu0 %v87
    %188 = vmatprep.subr.mxu0 0.0
    %189 = vmatpush2.msra.mxu0 %v86
    %190 = vmatprep.subr.mxu0 0.0
    %191 = vmatpush2.msra.mxu0 %v85
    %192 = vmatprep.subr.mxu0 0.0
    %193 = vmatpush2.msra.mxu0 %v84
    %194 = vmatprep.subr.mxu0 0.0
    %195 = vmatpush2.msra.mxu0 %v83
    %196 = vmatprep.subr.mxu0 0.0
    %197 = vmatpush2.msra.mxu0 %v82
    %198 = vmatprep.subr.mxu0 0.0
    %199 = vmatpush2.msra.mxu0 %v81
    %200 = vmatprep.mubr.f32.mxu0 %v62
    %201 = vmatmul.mubr.f32.gmra.mxu0 %v61
    %v202 = vpop.f32.mrf.mxu0
    %v203 = vadd.f32 %v134, %v202
    %v204 = vpop.f32.mrf.mxu0
    %205 = vdwg.mxu0
    %206 = vmatprep.subr.mxu0 0.0
    %207 = vmatpush1.msra.mxu0 %v112
    %208 = vmatprep.subr.mxu0 0.0
    %209 = vmatpush1.msra.mxu0 %v111
    %210 = vmatprep.subr.mxu0 0.0
    %211 = vmatpush1.msra.mxu0 %v110
    %212 = vmatprep.subr.mxu0 0.0
    %213 = vmatpush1.msra.mxu0 %v109
    %214 = vmatprep.subr.mxu0 0.0
    %215 = vmatpush1.msra.mxu0 %v108
    %216 = vmatprep.subr.mxu0 0.0
    %217 = vmatpush1.msra.mxu0 %v107
    %218 = vmatprep.subr.mxu0 0.0
    %219 = vmatpush1.msra.mxu0 %v106
    %220 = vmatprep.subr.mxu0 0.0
    %221 = vmatpush1.msra.mxu0 %v105
    %222 = vmatprep.subr.mxu0 0.0
    %223 = vmatpush1.msra.mxu0 %v104
    %224 = vmatprep.subr.mxu0 0.0
    %225 = vmatpush1.msra.mxu0 %v103
    %226 = vmatprep.subr.mxu0 0.0
    %227 = vmatpush1.msra.mxu0 %v102
    %228 = vmatprep.subr.mxu0 0.0
    %229 = vmatpush1.msra.mxu0 %v101
    %230 = vmatprep.subr.mxu0 0.0
    %231 = vmatpush1.msra.mxu0 %v100
    %232 = vmatprep.subr.mxu0 0.0
    %233 = vmatpush1.msra.mxu0 %v99
    %234 = vmatprep.subr.mxu0 0.0
    %235 = vmatpush1.msra.mxu0 %v98
    %236 = vmatprep.subr.mxu0 0.0
    %237 = vmatpush1.msra.mxu0 %v97
    %238 = vmatprep.subr.mxu0 0.0
    %239 = vmatpush2.msra.mxu0 %v128
    %240 = vmatprep.subr.mxu0 0.0
    %241 = vmatpush2.msra.mxu0 %v127
    %242 = vmatprep.subr.mxu0 0.0
    %243 = vmatpush2.msra.mxu0 %v126
    %244 = vmatprep.subr.mxu0 0.0
    %245 = vmatpush2.msra.mxu0 %v125
    %246 = vmatprep.subr.mxu0 0.0
    %247 = vmatpush2.msra.mxu0 %v124
    %248 = vmatprep.subr.mxu0 0.0
    %249 = vmatpush2.msra.mxu0 %v123
    %250 = vmatprep.subr.mxu0 0.0
    %251 = vmatpush2.msra.mxu0 %v122
    %252 = vmatprep.subr.mxu0 0.0
    %253 = vmatpush2.msra.mxu0 %v121
    %254 = vmatprep.subr.mxu0 0.0
    %255 = vmatpush2.msra.mxu0 %v120
    %256 = vmatprep.subr.mxu0 0.0
    %257 = vmatpush2.msra.mxu0 %v119
    %258 = vmatprep.subr.mxu0 0.0
    %259 = vmatpush2.msra.mxu0 %v118
    %260 = vmatprep.subr.mxu0 0.0
    %261 = vmatpush2.msra.mxu0 %v117
    %262 = vmatprep.subr.mxu0 0.0
    %263 = vmatpush2.msra.mxu0 %v116
    %264 = vmatprep.subr.mxu0 0.0
    %265 = vmatpush2.msra.mxu0 %v115
    %266 = vmatprep.subr.mxu0 0.0
    %267 = vmatpush2.msra.mxu0 %v114
    %268 = vmatprep.subr.mxu0 0.0
    %269 = vmatpush2.msra.mxu0 %v113
    %270 = vmatprep.mubr.f32.mxu0 %v64
    %271 = vmatmul.mubr.f32.gmra.mxu0 %v63
    %v272 = vpop.f32.mrf.mxu0
    %v273 = vadd.f32 %v203, %v272
    %v274 = vpop.f32.mrf.mxu0
    %275 = vdwg.mxu0
    %v276 = vmax.f32 %v273, 0.0
    %v277 = vld [vmem:[#allocation6] sm:$0xff]
    %v278 = vld [vmem:[#allocation6 + $0x8] sm:$0xff]
    %v279 = vld [vmem:[#allocation6 + $0x10] sm:$0xff]
    %v280 = vld [vmem:[#allocation6 + $0x18] sm:$0xff]
    %v281 = vld [vmem:[#allocation6 + $0x20] sm:$0xff]
    %v282 = vld [vmem:[#allocation6 + $0x28] sm:$0xff]
    %v283 = vld [vmem:[#allocation6 + $0x30] sm:$0xff]
    %v284 = vld [vmem:[#allocation6 + $0x38] sm:$0xff]
    %v285 = vld [vmem:[#allocation6 + $0x40] sm:$0xff]
    %v286 = vld [vmem:[#allocation6 + $0x48] sm:$0xff]
    %v287 = vld [vmem:[#allocation6 + $0x50] sm:$0xff]
    %v288 = vld [vmem:[#allocation6 + $0x58] sm:$0xff]
    %v289 = vld [vmem:[#allocation6 + $0x60] sm:$0xff]
    %v290 = vld [vmem:[#allocation6 + $0x68] sm:$0xff]
    %v291 = vld [vmem:[#allocation6 + $0x70] sm:$0xff]
    %v292 = vld [vmem:[#allocation6 + $0x78] sm:$0xff]
    %v293 = vld [vmem:[%s4] sm:$0x1]
    %v295 = vlaneseq
    %v296 = vshrl.u32 %v295, 7
    %v297 = vsub.s32 0, %v296
    %v298 = vrot.slane %v293, %v297
    %300 = vmatprep.subr.mxu0 0.0
    %301 = vmatpush1.msra.mxu0 %v292
    %302 = vmatprep.subr.mxu0 0.0
    %303 = vmatpush1.msra.mxu0 %v291
    %304 = vmatprep.subr.mxu0 0.0
    %305 = vmatpush1.msra.mxu0 %v290
    %306 = vmatprep.subr.mxu0 0.0
    %307 = vmatpush1.msra.mxu0 %v289
    %308 = vmatprep.subr.mxu0 0.0
    %309 = vmatpush1.msra.mxu0 %v288
    %310 = vmatprep.subr.mxu0 0.0
    %311 = vmatpush1.msra.mxu0 %v287
    %312 = vmatprep.subr.mxu0 0.0
    %313 = vmatpush1.msra.mxu0 %v286
    %314 = vmatprep.subr.mxu0 0.0
    %315 = vmatpush1.msra.mxu0 %v285
    %316 = vmatprep.subr.mxu0 0.0
    %317 = vmatpush1.msra.mxu0 %v284
    %318 = vmatprep.subr.mxu0 0.0
    %319 = vmatpush1.msra.mxu0 %v283
    %320 = vmatprep.subr.mxu0 0.0
    %321 = vmatpush1.msra.mxu0 %v282
    %322 = vmatprep.subr.mxu0 0.0
    %323 = vmatpush1.msra.mxu0 %v281
    %324 = vmatprep.subr.mxu0 0.0
    %325 = vmatpush1.msra.mxu0 %v280
    %326 = vmatprep.subr.mxu0 0.0
    %327 = vmatpush1.msra.mxu0 %v279
    %328 = vmatprep.subr.mxu0 0.0
    %329 = vmatpush1.msra.mxu0 %v278
    %330 = vmatprep.subr.mxu0 0.0
    %331 = vmatpush1.msra.mxu0 %v277
    %332 = vmatprep.subr.mxu0 0.0
    %333 = vmatpush2.msra.mxu0 0.0
    %334 = vmatprep.subr.mxu0 0.0
    %335 = vmatpush2.msra.mxu0 0.0
    %336 = vmatprep.subr.mxu0 0.0
    %337 = vmatpush2.msra.mxu0 0.0
    %338 = vmatprep.subr.mxu0 0.0
    %339 = vmatpush2.msra.mxu0 0.0
    %340 = vmatprep.subr.mxu0 0.0
    %341 = vmatpush2.msra.mxu0 0.0
    %342 = vmatprep.subr.mxu0 0.0
    %343 = vmatpush2.msra.mxu0 0.0
    %344 = vmatprep.subr.mxu0 0.0
    %345 = vmatpush2.msra.mxu0 0.0
    %346 = vmatprep.subr.mxu0 0.0
    %347 = vmatpush2.msra.mxu0 0.0
    %348 = vmatprep.subr.mxu0 0.0
    %349 = vmatpush2.msra.mxu0 0.0
    %350 = vmatprep.subr.mxu0 0.0
    %351 = vmatpush2.msra.mxu0 0.0
    %352 = vmatprep.subr.mxu0 0.0
    %353 = vmatpush2.msra.mxu0 0.0
    %354 = vmatprep.subr.mxu0 0.0
    %355 = vmatpush2.msra.mxu0 0.0
    %356 = vmatprep.subr.mxu0 0.0
    %357 = vmatpush2.msra.mxu0 0.0
    %358 = vmatprep.subr.mxu0 0.0
    %359 = vmatpush2.msra.mxu0 0.0
    %360 = vmatprep.subr.mxu0 0.0
    %361 = vmatpush2.msra.mxu0 0.0
    %362 = vmatprep.subr.mxu0 0.0
    %363 = vmatpush2.msra.mxu0 0.0
    %364 = vmatprep.mubr.f32.mxu0 0.0
    %365 = vmatmul.mubr.f32.gmra.mxu0 %v276
    %v366 = vpop.f32.mrf.mxu0
    %v367 = vadd.f32 %v298, %v366
    %v368 = vpop.f32.mrf.mxu0
    %369 = vdwg.mxu0
    %vm370 = vcmask 15360
    %371 = vst.msk [vmem:[%s5] sm:$0xff] %vm370, %v367
    %v372 = vlaneseq
    %v373 = vand.u32 %v372, 127
    %vm374 = vcmp.lt.s32.totalorder %v373, 2
    %v375 = vsel %vm374, %v367, -1e+30
    %376 = vmax.xlane.f32.xlu0 %v375
    %v377 = vpop.xlane.xlu0 %376
    %v378 = vsub.f32 %v367, %v377
    %v379 = vsel %vm374, %v378, -1e+30
    %v380 = vmul.f32 %v379, 1.442695
    %v381 = vpow.pop %v380
    %382 = vadd.xlane.f32.xlu0 %v381
    %v383 = vpop.xlane.xlu0 %382
    %v384 = vlog2.pop %v383
    %v385 = vmul.f32 %v384, 0.6931472
    %v386 = vadd.f32 %v377, %v385
    %vm387 = vcmask 7168
    %388 = vst.msk [vmem:[%s6] sm:$0xff] %vm387, %v386
    // Predicated region
    $region34: #{attention_forward.2} parent=1 // pred_check
      _
    $region35: #{attention_forward.2} parent=1 // pred_check_branch
      %390 = sbr.rel (0) target = $region37
    $region36: #{attention_forward.2} parent=1 // pred_region
      _
    $region37: #{attention_forward.2} parent=1 // pred_fallthru
      _
    // Predicated region
    $region38: #{attention_forward.2} parent=1 // pred_check
      _
    $region39: #{attention_forward.2} parent=1 // pred_check_branch
      %392 = sbr.rel (0) target = $region41
    $region40: #{attention_forward.2} parent=1 // pred_region
      _
    $region41: #{attention_forward.2} parent=1 // pred_fallthru
      _
    // Predicated region
    $region42: #{attention_forward.2} parent=1 // pred_check
      _
    $region43: #{attention_forward.2} parent=1 // pred_check_branch
      %394 = sbr.rel (0) target = $region45
    $region44: #{attention_forward.2} parent=1 // pred_region
      _
    $region45: #{attention_forward.2} parent=1 // pred_fallthru
      _
    // Predicated region
    $region46: #{attention_forward.2} parent=1 // pred_check
      _
    $region47: #{attention_forward.2} parent=1 // pred_check_branch
      %396 = sbr.rel (0) target = $region49
    $region48: #{attention_forward.2} parent=1 // pred_region
      _
    $region49: #{attention_forward.2} parent=1 // pred_fallthru
      _
    %397 = vsyncpa [#allocation3], 1
    %398 = vsyncpa [#allocation5], 1

</llo_original>
